<compile_context>
chip_gen: v7x
topology: tpu7x:2x2x1
jax: 0.10.0
libtpu: 0.0.40
codegen_flags: <defaults>
</compile_context>

<pallas_src>
import functools

import jax
import jax.numpy as jnp
from jax.experimental import pallas as pl
from jax.experimental.pallas import tpu as pltpu

LOG_STD_MAX = 2.0
LOG_STD_MIN = -5.0
HIDDEN = 256
ACT_PAD = 128          # lane-dense padded width per head
TILE_B_MAX = 256       # batch tile (fills the 256-wide MXU on v6e/v7x)


def _round_up(x, m):
    return ((x + m - 1) // m) * m


def actor_kernel(x_ref, w1_ref, b1_ref, w2_ref, b2_ref, wh_ref, bh_ref, out_ref):
    x = x_ref[...]

    # fc1 + ReLU
    h1 = jnp.dot(x, w1_ref[...], preferred_element_type=jnp.float32) + b1_ref[...]
    h1 = jnp.maximum(h1, 0.0)

    # fc2 + ReLU
    h2 = jnp.dot(h1, w2_ref[...], preferred_element_type=jnp.float32) + b2_ref[...]
    h2 = jnp.maximum(h2, 0.0)

    # fused heads: [tile_b, 2*ACT_PAD] = [mean_pad | logstd_pad]
    head = jnp.dot(h2, wh_ref[...], preferred_element_type=jnp.float32) + bh_ref[...]

    mean = head[:, :ACT_PAD]                      # 128-aligned static slices: no
    log_std = jnp.tanh(head[:, ACT_PAD:])         # layout cost, stay lane-dense
    log_std = LOG_STD_MIN + 0.5 * (LOG_STD_MAX - LOG_STD_MIN) * (log_std + 1.0)

    out_ref[:, :ACT_PAD] = mean.astype(out_ref.dtype)
    out_ref[:, ACT_PAD:] = log_std.astype(out_ref.dtype)


def pack_params(p):
    """One-time packing: fuse + lane-pad the two heads to [HIDDEN, 2*ACT_PAD]."""
    act_dim = p["wm"].shape[1]
    assert act_dim <= ACT_PAD, "action dim must fit in one 128-lane slab"
    pad_cols = ACT_PAD - act_dim
    wh = jnp.concatenate(
        [jnp.pad(p["wm"], ((0, 0), (0, pad_cols))),
         jnp.pad(p["ws"], ((0, 0), (0, pad_cols)))], axis=1)
    bh = jnp.concatenate(
        [jnp.pad(p["bm"], ((0, 0), (0, pad_cols))),
         jnp.pad(p["bs"], ((0, 0), (0, pad_cols)))], axis=1)
    return dict(w1=p["w1"], b1=p["b1"], w2=p["w2"], b2=p["b2"], wh=wh, bh=bh)


@functools.partial(jax.jit, static_argnames=("act_dim",))
def actor_forward(x, packed, *, act_dim):
    """x: [B, obs_dim] f32. packed: output of pack_params (weights are [in, out])."""
    B, obs_dim = x.shape

    # Batch tiling: multiple of 8 sublanes, capped at TILE_B_MAX.
    tile_b = min(TILE_B_MAX, _round_up(B, 8))
    b_pad = _round_up(B, tile_b)
    grid = (b_pad // tile_b,)

    # Pad batch so the grid covers it exactly.
    x_p = x if b_pad == B else jnp.pad(x, ((0, b_pad - B), (0, 0)))

    resident = lambda shape: pl.BlockSpec(shape, lambda i: (0, 0))

    cost = pl.CostEstimate(
        flops=2 * b_pad * (obs_dim * HIDDEN + HIDDEN * HIDDEN + HIDDEN * 2 * ACT_PAD),
        transcendentals=b_pad * ACT_PAD,
        bytes_accessed=4 * (b_pad * obs_dim                       # x
                            + obs_dim * HIDDEN + HIDDEN * HIDDEN  # w1, w2
                            + HIDDEN * 2 * ACT_PAD                # fused head weight
                            + 2 * HIDDEN + 2 * ACT_PAD            # biases
                            + b_pad * 2 * ACT_PAD),               # fused output slab
    )

    out_pad = pl.pallas_call(
        actor_kernel,
        out_shape=jax.ShapeDtypeStruct((b_pad, 2 * ACT_PAD), jnp.float32),
        grid=grid,
        in_specs=[
            pl.BlockSpec((tile_b, obs_dim), lambda i: (i, 0)),            # x tile
            resident((obs_dim, HIDDEN)), resident((1, HIDDEN)),           # fc1
            resident((HIDDEN, HIDDEN)), resident((1, HIDDEN)),            # fc2
            resident((HIDDEN, 2 * ACT_PAD)), resident((1, 2 * ACT_PAD)),  # fused heads
        ],
        out_specs=pl.BlockSpec((tile_b, 2 * ACT_PAD), lambda i: (i, 0)),
        compiler_params=pltpu.CompilerParams(
            dimension_semantics=("parallel",),
            vmem_limit_bytes=32 << 20,
        ),
        cost_estimate=cost,
    )(x_p, packed["w1"], packed["b1"], packed["w2"], packed["b2"],
      packed["wh"], packed["bh"])

    mean = out_pad[:B, :act_dim]
    log_std = out_pad[:B, ACT_PAD:ACT_PAD + act_dim]
    return mean, log_std


def init_params(key, obs_dim, act_dim):
    """PyTorch-style uniform(-1/sqrt(fan_in), 1/sqrt(fan_in)) init.

    Weights are stored transposed: [in_dim, out_dim]."""
    ks = jax.random.split(key, 8)

    def lin(kw, kb, fan_in, fan_out):
        bound = 1.0 / jnp.sqrt(jnp.float32(fan_in))
        w = jax.random.uniform(kw, (fan_in, fan_out), jnp.float32, -bound, bound)
        b = jax.random.uniform(kb, (1, fan_out), jnp.float32, -bound, bound)
        return w, b

    w1, b1 = lin(ks[0], ks[1], obs_dim, HIDDEN)
    w2, b2 = lin(ks[2], ks[3], HIDDEN, HIDDEN)
    wm, bm = lin(ks[4], ks[5], HIDDEN, act_dim)
    ws, bs = lin(ks[6], ks[7], HIDDEN, act_dim)
    return dict(w1=w1, b1=b1, w2=w2, b2=b2, wm=wm, bm=bm, ws=ws, bs=bs)


def actor_forward_ref(x, p):
    """Pure-JAX reference for correctness check."""
    h1 = jnp.maximum(x @ p["w1"] + p["b1"], 0.0)
    h2 = jnp.maximum(h1 @ p["w2"] + p["b2"], 0.0)
    mean = h2 @ p["wm"] + p["bm"]
    log_std = jnp.tanh(h2 @ p["ws"] + p["bs"])
    log_std = LOG_STD_MIN + 0.5 * (LOG_STD_MAX - LOG_STD_MIN) * (log_std + 1.0)
    return mean, log_std


if __name__ == "__main__":
    # Small, forward-consistent shapes: batch=8 observations of dim 8, action dim 4.
    B, OBS_DIM, ACT_DIM = 8, 8, 4

    key = jax.random.PRNGKey(0)
    k_params, k_x = jax.random.split(key)

    params = init_params(k_params, OBS_DIM, ACT_DIM)
    packed = pack_params(params)
    x = jax.random.normal(k_x, (B, OBS_DIM), jnp.float32)

    mean, log_std = actor_forward(x, packed, act_dim=ACT_DIM)
    jax.block_until_ready((mean, log_std))

    mean_ref, log_std_ref = actor_forward_ref(x, params)
    assert mean.shape == (B, ACT_DIM) and log_std.shape == (B, ACT_DIM)
    assert jnp.allclose(mean, mean_ref, atol=1e-5, rtol=1e-5)
    assert jnp.allclose(log_std, log_std_ref, atol=1e-5, rtol=1e-5)
    # log_std must lie inside [LOG_STD_MIN, LOG_STD_MAX]
    assert bool(jnp.all(log_std >= LOG_STD_MIN)) and bool(jnp.all(log_std <= LOG_STD_MAX))

    # Also exercise a batch that is not a tile multiple (pipelined multi-tile path).
    B2 = 300
    x2 = jax.random.normal(jax.random.PRNGKey(1), (B2, OBS_DIM), jnp.float32)
    m2, ls2 = actor_forward(x2, packed, act_dim=ACT_DIM)
    jax.block_until_ready((m2, ls2))
    m2_ref, ls2_ref = actor_forward_ref(x2, params)
    assert jnp.allclose(m2, m2_ref, atol=1e-5, rtol=1e-5)
    assert jnp.allclose(ls2, ls2_ref, atol=1e-5, rtol=1e-5)

    print("KERNEL_OK")
</pallas_src>

<mosaic_0001>
module attributes {stable_mosaic.version = 11 : i64} {
  func.func @actor_kernel(%arg0: i32, %arg1: memref<8x8xf32, #tpu.memory_space<vmem>>, %arg2: memref<8x256xf32, #tpu.memory_space<vmem>>, %arg3: memref<1x256xf32, #tpu.memory_space<vmem>>, %arg4: memref<256x256xf32, #tpu.memory_space<vmem>>, %arg5: memref<1x256xf32, #tpu.memory_space<vmem>>, %arg6: memref<256x256xf32, #tpu.memory_space<vmem>>, %arg7: memref<1x256xf32, #tpu.memory_space<vmem>>, %arg8: memref<8x256xf32, #tpu.memory_space<vmem>>) attributes {dimension_semantics = [#tpu.dimension_semantics<parallel>], iteration_bounds = array<i64: 1>, scalar_prefetch = 0 : i64, scratch_operands = 0 : i64, tpu.core_type = #tpu.core_type<tc>, window_params = [{transform_indices = @transform_0, window_bounds = array<i64: 8, 8>}, {pipeline_mode = #tpu.pipeline_mode<synchronous>, transform_indices = @transform_1, window_bounds = array<i64: 8, 256>}, {pipeline_mode = #tpu.pipeline_mode<synchronous>, transform_indices = @transform_2, window_bounds = array<i64: 1, 256>}, {pipeline_mode = #tpu.pipeline_mode<synchronous>, transform_indices = @transform_3, window_bounds = array<i64: 256, 256>}, {pipeline_mode = #tpu.pipeline_mode<synchronous>, transform_indices = @transform_4, window_bounds = array<i64: 1, 256>}, {pipeline_mode = #tpu.pipeline_mode<synchronous>, transform_indices = @transform_5, window_bounds = array<i64: 256, 256>}, {pipeline_mode = #tpu.pipeline_mode<synchronous>, transform_indices = @transform_6, window_bounds = array<i64: 1, 256>}, {transform_indices = @transform_7, window_bounds = array<i64: 8, 256>}]} {
    %c0 = arith.constant 0 : index
    %c0_0 = arith.constant 0 : index
    %0 = vector.load %arg1[%c0, %c0_0] : memref<8x8xf32, #tpu.memory_space<vmem>>, vector<8x8xf32>
    %c0_1 = arith.constant 0 : index
    %c0_2 = arith.constant 0 : index
    %1 = vector.load %arg2[%c0_1, %c0_2] : memref<8x256xf32, #tpu.memory_space<vmem>>, vector<8x256xf32>
    %cst = arith.constant dense<0.000000e+00> : vector<8x256xf32>
    %2 = tpu.matmul %0, %1, %cst {dimension_numbers = #tpu.dot_dimension_numbers<[1], [0], [0], [1], [0, 0, 1, 1], [], []>} : vector<8x8xf32>, vector<8x256xf32>, vector<8x256xf32> -> vector<8x256xf32>
    %c0_3 = arith.constant 0 : index
    %c0_4 = arith.constant 0 : index
    %3 = vector.load %arg3[%c0_3, %c0_4] : memref<1x256xf32, #tpu.memory_space<vmem>>, vector<1x256xf32>
    %4 = vector.broadcast %3 : vector<1x256xf32> to vector<8x256xf32>
    %5 = arith.addf %2, %4 : vector<8x256xf32>
    %cst_5 = arith.constant 0.000000e+00 : f32
    %6 = vector.broadcast %cst_5 : f32 to vector<8x256xf32>
    %7 = arith.maximumf %5, %6 : vector<8x256xf32>
    %c0_6 = arith.constant 0 : index
    %c0_7 = arith.constant 0 : index
    %8 = vector.load %arg4[%c0_6, %c0_7] : memref<256x256xf32, #tpu.memory_space<vmem>>, vector<256x256xf32>
    %cst_8 = arith.constant dense<0.000000e+00> : vector<8x256xf32>
    %9 = tpu.matmul %7, %8, %cst_8 {dimension_numbers = #tpu.dot_dimension_numbers<[1], [0], [0], [1], [0, 0, 1, 1], [], []>} : vector<8x256xf32>, vector<256x256xf32>, vector<8x256xf32> -> vector<8x256xf32>
    %c0_9 = arith.constant 0 : index
    %c0_10 = arith.constant 0 : index
    %10 = vector.load %arg5[%c0_9, %c0_10] : memref<1x256xf32, #tpu.memory_space<vmem>>, vector<1x256xf32>
    %11 = vector.broadcast %10 : vector<1x256xf32> to vector<8x256xf32>
    %12 = arith.addf %9, %11 : vector<8x256xf32>
    %cst_11 = arith.constant 0.000000e+00 : f32
    %13 = vector.broadcast %cst_11 : f32 to vector<8x256xf32>
    %14 = arith.maximumf %12, %13 : vector<8x256xf32>
    %c0_12 = arith.constant 0 : index
    %c0_13 = arith.constant 0 : index
    %15 = vector.load %arg6[%c0_12, %c0_13] : memref<256x256xf32, #tpu.memory_space<vmem>>, vector<256x256xf32>
    %cst_14 = arith.constant dense<0.000000e+00> : vector<8x256xf32>
    %16 = tpu.matmul %14, %15, %cst_14 {dimension_numbers = #tpu.dot_dimension_numbers<[1], [0], [0], [1], [0, 0, 1, 1], [], []>} : vector<8x256xf32>, vector<256x256xf32>, vector<8x256xf32> -> vector<8x256xf32>
    %c0_15 = arith.constant 0 : index
    %c0_16 = arith.constant 0 : index
    %17 = vector.load %arg7[%c0_15, %c0_16] : memref<1x256xf32, #tpu.memory_space<vmem>>, vector<1x256xf32>
    %18 = vector.broadcast %17 : vector<1x256xf32> to vector<8x256xf32>
    %19 = arith.addf %16, %18 : vector<8x256xf32>
    %20 = vector.extract_strided_slice %19 {offsets = [0, 0], sizes = [8, 128], strides = [1, 1]} : vector<8x256xf32> to vector<8x128xf32>
    %21 = vector.extract_strided_slice %19 {offsets = [0, 128], sizes = [8, 128], strides = [1, 1]} : vector<8x256xf32> to vector<8x128xf32>
    %22 = math.tanh %21 : vector<8x128xf32>
    %cst_17 = arith.constant 1.000000e+00 : f32
    %23 = vector.broadcast %cst_17 : f32 to vector<8x128xf32>
    %24 = arith.addf %22, %23 : vector<8x128xf32>
    %cst_18 = arith.constant 3.500000e+00 : f32
    %25 = vector.broadcast %cst_18 : f32 to vector<8x128xf32>
    %26 = arith.mulf %25, %24 : vector<8x128xf32>
    %cst_19 = arith.constant -5.000000e+00 : f32
    %27 = vector.broadcast %cst_19 : f32 to vector<8x128xf32>
    %28 = arith.addf %27, %26 : vector<8x128xf32>
    %c0_20 = arith.constant 0 : index
    %c0_21 = arith.constant 0 : index
    %29 = vector.load %arg8[%c0_20, %c0_21] : memref<8x256xf32, #tpu.memory_space<vmem>>, vector<8x128xf32>
    tpu.vector_store %arg8[%c0_20, %c0_21], %20 {strides = array<i32>} : memref<8x256xf32, #tpu.memory_space<vmem>>, vector<8x128xf32>,
    %c0_22 = arith.constant 0 : index
    %c128 = arith.constant 128 : index
    %30 = vector.load %arg8[%c0_22, %c128] : memref<8x256xf32, #tpu.memory_space<vmem>>, vector<8x128xf32>
    tpu.vector_store %arg8[%c0_22, %c128], %28 {strides = array<i32>} : memref<8x256xf32, #tpu.memory_space<vmem>>, vector<8x128xf32>,
    return
  }
  func.func @transform_0(%arg0: i32) -> (i32, i32) {
    %c0_i32 = arith.constant 0 : i32
    %c0_i32_0 = arith.constant 0 : i32
    return %arg0, %c0_i32 : i32, i32
  }
  func.func @transform_1(%arg0: i32) -> (i32, i32) {
    %c0_i32 = arith.constant 0 : i32
    %c0_i32_0 = arith.constant 0 : i32
    %c0_i32_1 = arith.constant 0 : i32
    return %c0_i32, %c0_i32_0 : i32, i32
  }
  func.func @transform_2(%arg0: i32) -> (i32, i32) {
    %c0_i32 = arith.constant 0 : i32
    %c0_i32_0 = arith.constant 0 : i32
    %c0_i32_1 = arith.constant 0 : i32
    return %c0_i32, %c0_i32_0 : i32, i32
  }
  func.func @transform_3(%arg0: i32) -> (i32, i32) {
    %c0_i32 = arith.constant 0 : i32
    %c0_i32_0 = arith.constant 0 : i32
    %c0_i32_1 = arith.constant 0 : i32
    return %c0_i32, %c0_i32_0 : i32, i32
  }
  func.func @transform_4(%arg0: i32) -> (i32, i32) {
    %c0_i32 = arith.constant 0 : i32
    %c0_i32_0 = arith.constant 0 : i32
    %c0_i32_1 = arith.constant 0 : i32
    return %c0_i32, %c0_i32_0 : i32, i32
  }
  func.func @transform_5(%arg0: i32) -> (i32, i32) {
    %c0_i32 = arith.constant 0 : i32
    %c0_i32_0 = arith.constant 0 : i32
    %c0_i32_1 = arith.constant 0 : i32
    return %c0_i32, %c0_i32_0 : i32, i32
  }
  func.func @transform_6(%arg0: i32) -> (i32, i32) {
    %c0_i32 = arith.constant 0 : i32
    %c0_i32_0 = arith.constant 0 : i32
    %c0_i32_1 = arith.constant 0 : i32
    return %c0_i32, %c0_i32_0 : i32, i32
  }
  func.func @transform_7(%arg0: i32) -> (i32, i32) {
    %c0_i32 = arith.constant 0 : i32
    %c0_i32_0 = arith.constant 0 : i32
    return %arg0, %c0_i32 : i32, i32
  }
}

</mosaic_0001>

<llo_original>
// kernel: actor_forward.1
$region0: #{actor_forward.1}
  #allocation0 [shape = 'u32[]', space=smem, size = 0x4, offset = 0x4, fixed_abs, tag = 'smem constant byte address 0x4 - core index']
  #allocation1 [shape = 'u32[144,128]{1,0:T(1,128)}', space=vmem, size = 0x12000, scoped, tag = 'internal scratch']
  %s0 = inlined_call_operand.hbm [shape: f32[8,8], index: 0, kind: input, shape index: {}]
  %s1 = inlined_call_operand.hbm [shape: f32[8,256], index: 1, kind: input, shape index: {}]
  %s2 = inlined_call_operand.vmem [shape: f32[1,256], index: 2, kind: input, shape index: {}]
  %s3 = inlined_call_operand.hbm [shape: f32[256,256], index: 3, kind: input, shape index: {}]
  %s4 = inlined_call_operand.vmem [shape: f32[1,256], index: 4, kind: input, shape index: {}]
  %s5 = inlined_call_operand.hbm [shape: f32[256,256], index: 5, kind: input, shape index: {}]
  %s6 = inlined_call_operand.vmem [shape: f32[1,256], index: 6, kind: input, shape index: {}]
  %s7 = inlined_call_operand.vmem [shape: f32[8,256], index: 7, kind: output, shape index: {}]
  %s8 = sld [smem:[#allocation0]]
  $region54: #{actor_forward.1} parent=0
    _
  %s10 = ssub.s32 1, %s8
  %s11 = scalar_select 0, %s10, %s8
  $region1: #{actor_forward.1} parent=0
    #allocation2 [shape = 'u8[4096]{0}', space=vmem, size = 0x1000, scoped, tag = 'input window, operand 0, single buffered']
    #allocation3 [shape = 's32[1]{0}', space=sflag, size = 0x4, scoped, tag = 'scoped memory for actor_forward.1']
    #allocation4 [shape = 'u8[8192]{0}', space=vmem, size = 0x2000, scoped, tag = 'input window, operand 1, single buffered']
    #allocation5 [shape = 's32[1]{0}', space=sflag, size = 0x4, scoped, tag = 'scoped memory for actor_forward.1']
    #allocation6 [shape = 'u8[262144]{0}', space=vmem, size = 0x40000, scoped, tag = 'input window, operand 3, single buffered']
    #allocation7 [shape = 'u8[262144]{0}', space=vmem, size = 0x40000, scoped, tag = 'input window, operand 5, single buffered']
    #allocation8 [shape = 's32[1]{0}', space=sflag, size = 0x4, scoped, tag = 'scoped memory for actor_forward.1']
    %12 = vsyncpa [#allocation3], 0
    %13 = vsyncpa [#allocation5], 0
    %14 = vsyncpa [#allocation8], 0
    // Predicated region
    $region2: #{actor_forward.1} parent=1 // pred_check
      _
    $region3: #{actor_forward.1} parent=1 // pred_check_branch
      %16 = sbr.rel (0) target = $region5
    $region4: #{actor_forward.1} parent=1 // pred_region
      %s18 = ssub.s32 128, 128
      %19 = vsyncadd [#allocation3], %s18
      %s21 = sshll.u32 [#allocation2], 4
      %s22 = int_to_ptr.vmem [resolvable:$true] %s21
      %24 = dma.hbm_to_vmem [thread:$0]  %s0, 128, %s22, [#allocation3]
    $region5: #{actor_forward.1} parent=1 // pred_fallthru
      _
    // Predicated region
    $region6: #{actor_forward.1} parent=1 // pred_check
      _
    $region7: #{actor_forward.1} parent=1 // pred_check_branch
      %26 = sbr.rel (0) target = $region9
    $region8: #{actor_forward.1} parent=1 // pred_region
      %s28 = ssub.s32 256, 256
      %29 = vsyncadd [#allocation5], %s28
      %s31 = sshll.u32 [#allocation4], 4
      %s32 = int_to_ptr.vmem [resolvable:$true] %s31
      %34 = dma.hbm_to_vmem [thread:$0]  %s1, 256, %s32, [#allocation5]
    $region9: #{actor_forward.1} parent=1 // pred_fallthru
      _
    // Predicated region
    $region10: #{actor_forward.1} parent=1 // pred_check
      _
    $region11: #{actor_forward.1} parent=1 // pred_check_branch
      %36 = sbr.rel (0) target = $region13
    $region12: #{actor_forward.1} parent=1 // pred_region
      _
    $region13: #{actor_forward.1} parent=1 // pred_fallthru
      _
    // Predicated region
    $region14: #{actor_forward.1} parent=1 // pred_check
      _
    $region15: #{actor_forward.1} parent=1 // pred_check_branch
      %38 = sbr.rel (0) target = $region17
    $region16: #{actor_forward.1} parent=1 // pred_region
      %s40 = ssub.s32 8192, 8192
      %41 = vsyncadd [#allocation5], %s40
      %s42 = sshll.u32 [#allocation6], 4
      %s43 = int_to_ptr.vmem [resolvable:$true] %s42
      %48 = dma.hbm_to_vmem [thread:$0]  %s3, 8192, %s43, [#allocation5], 256, 256, 16
    $region17: #{actor_forward.1} parent=1 // pred_fallthru
      _
    // Predicated region
    $region18: #{actor_forward.1} parent=1 // pred_check
      _
    $region19: #{actor_forward.1} parent=1 // pred_check_branch
      %50 = sbr.rel (0) target = $region21
    $region20: #{actor_forward.1} parent=1 // pred_region
      _
    $region21: #{actor_forward.1} parent=1 // pred_fallthru
      _
    // Predicated region
    $region22: #{actor_forward.1} parent=1 // pred_check
      _
    $region23: #{actor_forward.1} parent=1 // pred_check_branch
      %52 = sbr.rel (0) target = $region25
    $region24: #{actor_forward.1} parent=1 // pred_region
      %s54 = ssub.s32 8192, 8192
      %55 = vsyncadd [#allocation8], %s54
      %s56 = sshll.u32 [#allocation7], 4
      %s57 = int_to_ptr.vmem [resolvable:$true] %s56
      %62 = dma.hbm_to_vmem [thread:$0]  %s5, 8192, %s57, [#allocation8], 256, 256, 16
    $region25: #{actor_forward.1} parent=1 // pred_fallthru
      _
    // Predicated region
    $region26: #{actor_forward.1} parent=1 // pred_check
      _
    $region27: #{actor_forward.1} parent=1 // pred_check_branch
      %64 = sbr.rel (0) target = $region29
    $region28: #{actor_forward.1} parent=1 // pred_region
      _
    $region29: #{actor_forward.1} parent=1 // pred_fallthru
      _
    // Predicated region
    $region30: #{actor_forward.1} parent=1 // pred_check
      _
    $region31: #{actor_forward.1} parent=1 // pred_check_branch
      %66 = sbr.rel (0) target = $region33
    $region32: #{actor_forward.1} parent=1 // pred_region
      %67 = dma.done [#allocation3], 128
    $region33: #{actor_forward.1} parent=1 // pred_fallthru
      _
    // Predicated region
    $region34: #{actor_forward.1} parent=1 // pred_check
      _
    $region35: #{actor_forward.1} parent=1 // pred_check_branch
      %69 = sbr.rel (0) target = $region37
    $region36: #{actor_forward.1} parent=1 // pred_region
      %70 = dma.done [#allocation5], 256
    $region37: #{actor_forward.1} parent=1 // pred_fallthru
      _
    // Predicated region
    $region38: #{actor_forward.1} parent=1 // pred_check
      _
    $region39: #{actor_forward.1} parent=1 // pred_check_branch
      %72 = sbr.rel (0) target = $region41
    $region40: #{actor_forward.1} parent=1 // pred_region
      %73 = dma.done [#allocation5], 8192
    $region41: #{actor_forward.1} parent=1 // pred_fallthru
      _
    // Predicated region
    $region42: #{actor_forward.1} parent=1 // pred_check
      _
    $region43: #{actor_forward.1} parent=1 // pred_check_branch
      %75 = sbr.rel (0) target = $region45
    $region44: #{actor_forward.1} parent=1 // pred_region
      %76 = dma.done [#allocation8], 8192
    $region45: #{actor_forward.1} parent=1 // pred_fallthru
      _
    %v77 = vld [vmem:[#allocation2] sm:$0xff]
    %v78 = vld [vmem:[#allocation4] sm:$0xff]
    %v79 = vld [vmem:[#allocation4 + $0x8] sm:$0xff]
    %v80 = vld [vmem:[%s2] sm:$0x3]
    %v82 = vlaneseq
    %v83 = vshrl.u32 %v82, 7
    %v84 = vsub.s32 0, %v83
    %v85 = vrot.slane %v80, %v84
    %v86 = vlaneseq
    %v87 = vshrl.u32 %v86, 7
    %v88 = vsub.s32 1, %v87
    %v89 = vrot.slane %v80, %v88
    %vm92 = vcmask 64512
    %v94 = vsel %vm92, %v77, 0
    %96 = vmatprep.subr.mxu0 %v79
    %97 = vmatpush1.msra.mxu0 %v78
    %98 = vmatprep.subr.mxu0 0.0
    %99 = vmatpush1.msra.mxu0 0.0
    %100 = vmatprep.subr.mxu0 0.0
    %101 = vmatpush1.msra.mxu0 0.0
    %102 = vmatprep.subr.mxu0 0.0
    %103 = vmatpush1.msra.mxu0 0.0
    %104 = vmatprep.subr.mxu0 0.0
    %105 = vmatpush1.msra.mxu0 0.0
    %106 = vmatprep.subr.mxu0 0.0
    %107 = vmatpush1.msra.mxu0 0.0
    %108 = vmatprep.subr.mxu0 0.0
    %109 = vmatpush1.msra.mxu0 0.0
    %110 = vmatprep.subr.mxu0 0.0
    %111 = vmatpush1.msra.mxu0 0.0
    %112 = vmatprep.subr.mxu0 0.0
    %113 = vmatpush1.msra.mxu0 0.0
    %114 = vmatprep.subr.mxu0 0.0
    %115 = vmatpush1.msra.mxu0 0.0
    %116 = vmatprep.subr.mxu0 0.0
    %117 = vmatpush1.msra.mxu0 0.0
    %118 = vmatprep.subr.mxu0 0.0
    %119 = vmatpush1.msra.mxu0 0.0
    %120 = vmatprep.subr.mxu0 0.0
    %121 = vmatpush1.msra.mxu0 0.0
    %122 = vmatprep.subr.mxu0 0.0
    %123 = vmatpush1.msra.mxu0 0.0
    %124 = vmatprep.subr.mxu0 0.0
    %125 = vmatpush1.msra.mxu0 0.0
    %126 = vmatprep.subr.mxu0 0.0
    %127 = vmatpush1.msra.mxu0 0.0
    %128 = vmatprep.subr.mxu0 0.0
    %129 = vmatpush1.msra.mxu0 0.0
    %130 = vmatprep.subr.mxu0 0.0
    %131 = vmatpush1.msra.mxu0 0.0
    %132 = vmatprep.subr.mxu0 0.0
    %133 = vmatpush1.msra.mxu0 0.0
    %134 = vmatprep.subr.mxu0 0.0
    %135 = vmatpush1.msra.mxu0 0.0
    %136 = vmatprep.subr.mxu0 0.0
    %137 = vmatpush1.msra.mxu0 0.0
    %138 = vmatprep.subr.mxu0 0.0
    %139 = vmatpush1.msra.mxu0 0.0
    %140 = vmatprep.subr.mxu0 0.0
    %141 = vmatpush1.msra.mxu0 0.0
    %142 = vmatprep.subr.mxu0 0.0
    %143 = vmatpush1.msra.mxu0 0.0
    %144 = vmatprep.subr.mxu0 0.0
    %145 = vmatpush1.msra.mxu0 0.0
    %146 = vmatprep.subr.mxu0 0.0
    %147 = vmatpush1.msra.mxu0 0.0
    %148 = vmatprep.subr.mxu0 0.0
    %149 = vmatpush1.msra.mxu0 0.0
    %150 = vmatprep.subr.mxu0 0.0
    %151 = vmatpush1.msra.mxu0 0.0
    %152 = vmatprep.subr.mxu0 0.0
    %153 = vmatpush1.msra.mxu0 0.0
    %154 = vmatprep.subr.mxu0 0.0
    %155 = vmatpush1.msra.mxu0 0.0
    %156 = vmatprep.subr.mxu0 0.0
    %157 = vmatpush1.msra.mxu0 0.0
    %158 = vmatprep.subr.mxu0 0.0
    %159 = vmatpush1.msra.mxu0 0.0
    %160 = vmatprep.mubr.f32.mxu0 0.0
    %161 = vmatmul.mubr.f32.gmra.mrb[0].mxu0 %v94
    %v162 = vpop.f32.mrb[0].mxu0
    %v163 = vadd.f32 %v85, %v162
    %v164 = vpop.f32.mrb[0].mxu0
    %v165 = vadd.f32 %v89, %v164
    %166 = vdwg.mxu0
    %v167 = vmax.f32 %v163, 0.0
    %v168 = vmax.f32 %v165, 0.0
    %v169 = vld [vmem:[#allocation6] sm:$0xff]
    %v170 = vld [vmem:[#allocation6 + $0x8] sm:$0xff]
    %v171 = vld [vmem:[#allocation6 + $0x10] sm:$0xff]
    %v172 = vld [vmem:[#allocation6 + $0x18] sm:$0xff]
    %v173 = vld [vmem:[#allocation6 + $0x20] sm:$0xff]
    %v174 = vld [vmem:[#allocation6 + $0x28] sm:$0xff]
    %v175 = vld [vmem:[#allocation6 + $0x30] sm:$0xff]
    %v176 = vld [vmem:[#allocation6 + $0x38] sm:$0xff]
    %v177 = vld [vmem:[#allocation6 + $0x40] sm:$0xff]
    %v178 = vld [vmem:[#allocation6 + $0x48] sm:$0xff]
    %v179 = vld [vmem:[#allocation6 + $0x50] sm:$0xff]
    %v180 = vld [vmem:[#allocation6 + $0x58] sm:$0xff]
    %v181 = vld [vmem:[#allocation6 + $0x60] sm:$0xff]
    %v182 = vld [vmem:[#allocation6 + $0x68] sm:$0xff]
    %v183 = vld [vmem:[#allocation6 + $0x70] sm:$0xff]
    %v184 = vld [vmem:[#allocation6 + $0x78] sm:$0xff]
    %v185 = vld [vmem:[#allocation6 + $0x80] sm:$0xff]
    %v186 = vld [vmem:[#allocation6 + $0x88] sm:$0xff]
    %v187 = vld [vmem:[#allocation6 + $0x90] sm:$0xff]
    %v188 = vld [vmem:[#allocation6 + $0x98] sm:$0xff]
    %v189 = vld [vmem:[#allocation6 + $0xa0] sm:$0xff]
    %v190 = vld [vmem:[#allocation6 + $0xa8] sm:$0xff]
    %v191 = vld [vmem:[#allocation6 + $0xb0] sm:$0xff]
    %v192 = vld [vmem:[#allocation6 + $0xb8] sm:$0xff]
    %v193 = vld [vmem:[#allocation6 + $0xc0] sm:$0xff]
    %v194 = vld [vmem:[#allocation6 + $0xc8] sm:$0xff]
    %v195 = vld [vmem:[#allocation6 + $0xd0] sm:$0xff]
    %v196 = vld [vmem:[#allocation6 + $0xd8] sm:$0xff]
    %v197 = vld [vmem:[#allocation6 + $0xe0] sm:$0xff]
    %v198 = vld [vmem:[#allocation6 + $0xe8] sm:$0xff]
    %v199 = vld [vmem:[#allocation6 + $0xf0] sm:$0xff]
    %v200 = vld [vmem:[#allocation6 + $0xf8] sm:$0xff]
    %v201 = vld [vmem:[#allocation6 + $0x100] sm:$0xff]
    %v202 = vld [vmem:[#allocation6 + $0x108] sm:$0xff]
    %v203 = vld [vmem:[#allocation6 + $0x110] sm:$0xff]
    %v204 = vld [vmem:[#allocation6 + $0x118] sm:$0xff]
    %v205 = vld [vmem:[#allocation6 + $0x120] sm:$0xff]
    %v206 = vld [vmem:[#allocation6 + $0x128] sm:$0xff]
    %v207 = vld [vmem:[#allocation6 + $0x130] sm:$0xff]
    %v208 = vld [vmem:[#allocation6 + $0x138] sm:$0xff]
    %v209 = vld [vmem:[#allocation6 + $0x140] sm:$0xff]
    %v210 = vld [vmem:[#allocation6 + $0x148] sm:$0xff]
    %v211 = vld [vmem:[#allocation6 + $0x150] sm:$0xff]
    %v212 = vld [vmem:[#allocation6 + $0x158] sm:$0xff]
    %v213 = vld [vmem:[#allocation6 + $0x160] sm:$0xff]
    %v214 = vld [vmem:[#allocation6 + $0x168] sm:$0xff]
    %v215 = vld [vmem:[#allocation6 + $0x170] sm:$0xff]
    %v216 = vld [vmem:[#allocation6 + $0x178] sm:$0xff]
    %v217 = vld [vmem:[#allocation6 + $0x180] sm:$0xff]
    %v218 = vld [vmem:[#allocation6 + $0x188] sm:$0xff]
    %v219 = vld [vmem:[#allocation6 + $0x190] sm:$0xff]
    %v220 = vld [vmem:[#allocation6 + $0x198] sm:$0xff]
    %v221 = vld [vmem:[#allocation6 + $0x1a0] sm:$0xff]
    %v222 = vld [vmem:[#allocation6 + $0x1a8] sm:$0xff]
    %v223 = vld [vmem:[#allocation6 + $0x1b0] sm:$0xff]
    %v224 = vld [vmem:[#allocation6 + $0x1b8] sm:$0xff]
    %v225 = vld [vmem:[#allocation6 + $0x1c0] sm:$0xff]
    %v226 = vld [vmem:[#allocation6 + $0x1c8] sm:$0xff]
    %v227 = vld [vmem:[#allocation6 + $0x1d0] sm:$0xff]
    %v228 = vld [vmem:[#allocation6 + $0x1d8] sm:$0xff]
    %v229 = vld [vmem:[#allocation6 + $0x1e0] sm:$0xff]
    %v230 = vld [vmem:[#allocation6 + $0x1e8] sm:$0xff]
    %v231 = vld [vmem:[#allocation6 + $0x1f0] sm:$0xff]
    %v232 = vld [vmem:[#allocation6 + $0x1f8] sm:$0xff]
    %v233 = vld [vmem:[%s4] sm:$0x3]
    %v235 = vlaneseq
    %v236 = vshrl.u32 %v235, 7
    %v237 = vsub.s32 0, %v236
    %v238 = vrot.slane %v233, %v237
    %v239 = vlaneseq
    %v240 = vshrl.u32 %v239, 7
    %v241 = vsub.s32 1, %v240
    %v242 = vrot.slane %v233, %v241
    %245 = vmatprep.subr.mxu0 %v170
    %246 = vmatpush1.msra.mxu0 %v169
    %247 = vmatprep.subr.mxu0 %v172
    %248 = vmatpush1.msra.mxu0 %v171
    %249 = vmatprep.subr.mxu0 %v174
    %250 = vmatpush1.msra.mxu0 %v173
    %251 = vmatprep.subr.mxu0 %v176
    %252 = vmatpush1.msra.mxu0 %v175
    %253 = vmatprep.subr.mxu0 %v178
    %254 = vmatpush1.msra.mxu0 %v177
    %255 = vmatprep.subr.mxu0 %v180
    %256 = vmatpush1.msra.mxu0 %v179
    %257 = vmatprep.subr.mxu0 %v182
    %258 = vmatpush1.msra.mxu0 %v181
    %259 = vmatprep.subr.mxu0 %v184
    %260 = vmatpush1.msra.mxu0 %v183
    %261 = vmatprep.subr.mxu0 %v186
    %262 = vmatpush1.msra.mxu0 %v185
    %263 = vmatprep.subr.mxu0 %v188
    %264 = vmatpush1.msra.mxu0 %v187
    %265 = vmatprep.subr.mxu0 %v190
    %266 = vmatpush1.msra.mxu0 %v189
    %267 = vmatprep.subr.mxu0 %v192
    %268 = vmatpush1.msra.mxu0 %v191
    %269 = vmatprep.subr.mxu0 %v194
    %270 = vmatpush1.msra.mxu0 %v193
    %271 = vmatprep.subr.mxu0 %v196
    %272 = vmatpush1.msra.mxu0 %v195
    %273 = vmatprep.subr.mxu0 %v198
    %274 = vmatpush1.msra.mxu0 %v197
    %275 = vmatprep.subr.mxu0 %v200
    %276 = vmatpush1.msra.mxu0 %v199
    %277 = vmatprep.subr.mxu0 %v202
    %278 = vmatpush1.msra.mxu0 %v201
    %279 = vmatprep.subr.mxu0 %v204
    %280 = vmatpush1.msra.mxu0 %v203
    %281 = vmatprep.subr.mxu0 %v206
    %282 = vmatpush1.msra.mxu0 %v205
    %283 = vmatprep.subr.mxu0 %v208
    %284 = vmatpush1.msra.mxu0 %v207
    %285 = vmatprep.subr.mxu0 %v210
    %286 = vmatpush1.msra.mxu0 %v209
    %287 = vmatprep.subr.mxu0 %v212
    %288 = vmatpush1.msra.mxu0 %v211
    %289 = vmatprep.subr.mxu0 %v214
    %290 = vmatpush1.msra.mxu0 %v213
    %291 = vmatprep.subr.mxu0 %v216
    %292 = vmatpush1.msra.mxu0 %v215
    %293 = vmatprep.subr.mxu0 %v218
    %294 = vmatpush1.msra.mxu0 %v217
    %295 = vmatprep.subr.mxu0 %v220
    %296 = vmatpush1.msra.mxu0 %v219
    %297 = vmatprep.subr.mxu0 %v222
    %298 = vmatpush1.msra.mxu0 %v221
    %299 = vmatprep.subr.mxu0 %v224
    %300 = vmatpush1.msra.mxu0 %v223
    %301 = vmatprep.subr.mxu0 %v226
    %302 = vmatpush1.msra.mxu0 %v225
    %303 = vmatprep.subr.mxu0 %v228
    %304 = vmatpush1.msra.mxu0 %v227
    %305 = vmatprep.subr.mxu0 %v230
    %306 = vmatpush1.msra.mxu0 %v229
    %307 = vmatprep.subr.mxu0 %v232
    %308 = vmatpush1.msra.mxu0 %v231
    %309 = vmatprep.mubr.f32.mxu0 %v168
    %310 = vmatmul.mubr.f32.gmra.mrb[0].mxu0 %v167
    %v311 = vpop.f32.mrb[0].mxu0
    %v312 = vadd.f32 %v238, %v311
    %v313 = vpop.f32.mrb[0].mxu0
    %v314 = vadd.f32 %v242, %v313
    %315 = vdwg.mxu0
    %v316 = vmax.f32 %v312, 0.0
    %v317 = vmax.f32 %v314, 0.0
    %v318 = vld [vmem:[#allocation7] sm:$0xff]
    %v319 = vld [vmem:[#allocation7 + $0x8] sm:$0xff]
    %v320 = vld [vmem:[#allocation7 + $0x10] sm:$0xff]
    %v321 = vld [vmem:[#allocation7 + $0x18] sm:$0xff]
    %v322 = vld [vmem:[#allocation7 + $0x20] sm:$0xff]
    %v323 = vld [vmem:[#allocation7 + $0x28] sm:$0xff]
    %v324 = vld [vmem:[#allocation7 + $0x30] sm:$0xff]
    %v325 = vld [vmem:[#allocation7 + $0x38] sm:$0xff]
    %v326 = vld [vmem:[#allocation7 + $0x40] sm:$0xff]
    %v327 = vld [vmem:[#allocation7 + $0x48] sm:$0xff]
    %v328 = vld [vmem:[#allocation7 + $0x50] sm:$0xff]
    %v329 = vld [vmem:[#allocation7 + $0x58] sm:$0xff]
    %v330 = vld [vmem:[#allocation7 + $0x60] sm:$0xff]
    %v331 = vld [vmem:[#allocation7 + $0x68] sm:$0xff]
    %v332 = vld [vmem:[#allocation7 + $0x70] sm:$0xff]
    %v333 = vld [vmem:[#allocation7 + $0x78] sm:$0xff]
    %v334 = vld [vmem:[#allocation7 + $0x80] sm:$0xff]
    %v335 = vld [vmem:[#allocation7 + $0x88] sm:$0xff]
    %v336 = vld [vmem:[#allocation7 + $0x90] sm:$0xff]
    %v337 = vld [vmem:[#allocation7 + $0x98] sm:$0xff]
    %v338 = vld [vmem:[#allocation7 + $0xa0] sm:$0xff]
    %v339 = vld [vmem:[#allocation7 + $0xa8] sm:$0xff]
    %v340 = vld [vmem:[#allocation7 + $0xb0] sm:$0xff]
    %v341 = vld [vmem:[#allocation7 + $0xb8] sm:$0xff]
    %v342 = vld [vmem:[#allocation7 + $0xc0] sm:$0xff]
    %v343 = vld [vmem:[#allocation7 + $0xc8] sm:$0xff]
    %v344 = vld [vmem:[#allocation7 + $0xd0] sm:$0xff]
    %v345 = vld [vmem:[#allocation7 + $0xd8] sm:$0xff]
    %v346 = vld [vmem:[#allocation7 + $0xe0] sm:$0xff]
    %v347 = vld [vmem:[#allocation7 + $0xe8] sm:$0xff]
    %v348 = vld [vmem:[#allocation7 + $0xf0] sm:$0xff]
    %v349 = vld [vmem:[#allocation7 + $0xf8] sm:$0xff]
    %v350 = vld [vmem:[#allocation7 + $0x100] sm:$0xff]
    %v351 = vld [vmem:[#allocation7 + $0x108] sm:$0xff]
    %v352 = vld [vmem:[#allocation7 + $0x110] sm:$0xff]
    %v353 = vld [vmem:[#allocation7 + $0x118] sm:$0xff]
    %v354 = vld [vmem:[#allocation7 + $0x120] sm:$0xff]
    %v355 = vld [vmem:[#allocation7 + $0x128] sm:$0xff]
    %v356 = vld [vmem:[#allocation7 + $0x130] sm:$0xff]
    %v357 = vld [vmem:[#allocation7 + $0x138] sm:$0xff]
    %v358 = vld [vmem:[#allocation7 + $0x140] sm:$0xff]
    %v359 = vld [vmem:[#allocation7 + $0x148] sm:$0xff]
    %v360 = vld [vmem:[#allocation7 + $0x150] sm:$0xff]
    %v361 = vld [vmem:[#allocation7 + $0x158] sm:$0xff]
    %v362 = vld [vmem:[#allocation7 + $0x160] sm:$0xff]
    %v363 = vld [vmem:[#allocation7 + $0x168] sm:$0xff]
    %v364 = vld [vmem:[#allocation7 + $0x170] sm:$0xff]
    %v365 = vld [vmem:[#allocation7 + $0x178] sm:$0xff]
    %v366 = vld [vmem:[#allocation7 + $0x180] sm:$0xff]
    %v367 = vld [vmem:[#allocation7 + $0x188] sm:$0xff]
    %v368 = vld [vmem:[#allocation7 + $0x190] sm:$0xff]
    %v369 = vld [vmem:[#allocation7 + $0x198] sm:$0xff]
    %v370 = vld [vmem:[#allocation7 + $0x1a0] sm:$0xff]
    %v371 = vld [vmem:[#allocation7 + $0x1a8] sm:$0xff]
    %v372 = vld [vmem:[#allocation7 + $0x1b0] sm:$0xff]
    %v373 = vld [vmem:[#allocation7 + $0x1b8] sm:$0xff]
    %v374 = vld [vmem:[#allocation7 + $0x1c0] sm:$0xff]
    %v375 = vld [vmem:[#allocation7 + $0x1c8] sm:$0xff]
    %v376 = vld [vmem:[#allocation7 + $0x1d0] sm:$0xff]
    %v377 = vld [vmem:[#allocation7 + $0x1d8] sm:$0xff]
    %v378 = vld [vmem:[#allocation7 + $0x1e0] sm:$0xff]
    %v379 = vld [vmem:[#allocation7 + $0x1e8] sm:$0xff]
    %v380 = vld [vmem:[#allocation7 + $0x1f0] sm:$0xff]
    %v381 = vld [vmem:[#allocation7 + $0x1f8] sm:$0xff]
    %v382 = vld [vmem:[%s6] sm:$0x3]
    %v384 = vlaneseq
    %v385 = vshrl.u32 %v384, 7
    %v386 = vsub.s32 0, %v385
    %v387 = vrot.slane %v382, %v386
    %v388 = vlaneseq
    %v389 = vshrl.u32 %v388, 7
    %v390 = vsub.s32 1, %v389
    %v391 = vrot.slane %v382, %v390
    %394 = vmatprep.subr.mxu0 %v319
    %395 = vmatpush1.msra.mxu0 %v318
    %396 = vmatprep.subr.mxu0 %v321
    %397 = vmatpush1.msra.mxu0 %v320
    %398 = vmatprep.subr.mxu0 %v323
    %399 = vmatpush1.msra.mxu0 %v322
    %400 = vmatprep.subr.mxu0 %v325
    %401 = vmatpush1.msra.mxu0 %v324
    %402 = vmatprep.subr.mxu0 %v327
    %403 = vmatpush1.msra.mxu0 %v326
    %404 = vmatprep.subr.mxu0 %v329
    %405 = vmatpush1.msra.mxu0 %v328
    %406 = vmatprep.subr.mxu0 %v331
    %407 = vmatpush1.msra.mxu0 %v330
    %408 = vmatprep.subr.mxu0 %v333
    %409 = vmatpush1.msra.mxu0 %v332
    %410 = vmatprep.subr.mxu0 %v335
    %411 = vmatpush1.msra.mxu0 %v334
    %412 = vmatprep.subr.mxu0 %v337
    %413 = vmatpush1.msra.mxu0 %v336
    %414 = vmatprep.subr.mxu0 %v339
    %415 = vmatpush1.msra.mxu0 %v338
    %416 = vmatprep.subr.mxu0 %v341
    %417 = vmatpush1.msra.mxu0 %v340
    %418 = vmatprep.subr.mxu0 %v343
    %419 = vmatpush1.msra.mxu0 %v342
    %420 = vmatprep.subr.mxu0 %v345
    %421 = vmatpush1.msra.mxu0 %v344
    %422 = vmatprep.subr.mxu0 %v347
    %423 = vmatpush1.msra.mxu0 %v346
    %424 = vmatprep.subr.mxu0 %v349
    %425 = vmatpush1.msra.mxu0 %v348
    %426 = vmatprep.subr.mxu0 %v351
    %427 = vmatpush1.msra.mxu0 %v350
    %428 = vmatprep.subr.mxu0 %v353
    %429 = vmatpush1.msra.mxu0 %v352
    %430 = vmatprep.subr.mxu0 %v355
    %431 = vmatpush1.msra.mxu0 %v354
    %432 = vmatprep.subr.mxu0 %v357
    %433 = vmatpush1.msra.mxu0 %v356
    %434 = vmatprep.subr.mxu0 %v359
    %435 = vmatpush1.msra.mxu0 %v358
    %436 = vmatprep.subr.mxu0 %v361
    %437 = vmatpush1.msra.mxu0 %v360
    %438 = vmatprep.subr.mxu0 %v363
    %439 = vmatpush1.msra.mxu0 %v362
    %440 = vmatprep.subr.mxu0 %v365
    %441 = vmatpush1.msra.mxu0 %v364
    %442 = vmatprep.subr.mxu0 %v367
    %443 = vmatpush1.msra.mxu0 %v366
    %444 = vmatprep.subr.mxu0 %v369
    %445 = vmatpush1.msra.mxu0 %v368
    %446 = vmatprep.subr.mxu0 %v371
    %447 = vmatpush1.msra.mxu0 %v370
    %448 = vmatprep.subr.mxu0 %v373
    %449 = vmatpush1.msra.mxu0 %v372
    %450 = vmatprep.subr.mxu0 %v375
    %451 = vmatpush1.msra.mxu0 %v374
    %452 = vmatprep.subr.mxu0 %v377
    %453 = vmatpush1.msra.mxu0 %v376
    %454 = vmatprep.subr.mxu0 %v379
    %455 = vmatpush1.msra.mxu0 %v378
    %456 = vmatprep.subr.mxu0 %v381
    %457 = vmatpush1.msra.mxu0 %v380
    %458 = vmatprep.mubr.f32.mxu0 %v317
    %459 = vmatmul.mubr.f32.gmra.mrb[0].mxu0 %v316
    %v460 = vpop.f32.mrb[0].mxu0
    %v461 = vadd.f32 %v387, %v460
    %v462 = vpop.f32.mrb[0].mxu0
    %v463 = vadd.f32 %v391, %v462
    %464 = vdwg.mxu0
    %v465 = vtanh.pop %v463
    %v466 = vadd.f32 %v465, 1.0
    %v467 = vmul.f32 %v466, 3.5
    %v468 = vadd.f32 %v467, -5.0
    %469 = vst [vmem:[%s7] sm:$0xff] %v461
    %470 = vst [vmem:[%s7 + $0x8] sm:$0xff] %v468
    // Predicated region
    $region46: #{actor_forward.1} parent=1 // pred_check
      _
    $region47: #{actor_forward.1} parent=1 // pred_check_branch
      %472 = sbr.rel (0) target = $region49
    $region48: #{actor_forward.1} parent=1 // pred_region
      _
    $region49: #{actor_forward.1} parent=1 // pred_fallthru
      _
    // Predicated region
    $region50: #{actor_forward.1} parent=1 // pred_check
      _
    $region51: #{actor_forward.1} parent=1 // pred_check_branch
      %474 = sbr.rel (0) target = $region53
    $region52: #{actor_forward.1} parent=1 // pred_region
      _
    $region53: #{actor_forward.1} parent=1 // pred_fallthru
      _
    %475 = vsyncpa [#allocation3], 1
    %476 = vsyncpa [#allocation5], 1
    %477 = vsyncpa [#allocation8], 1

</llo_original>
